<compile_context>
chip_gen: v7x
topology: tpu7x:2x2x1
jax: 0.10.0
libtpu: 0.0.40
codegen_flags: <defaults>
</compile_context>

<pallas_src>
import numpy as np
import jax
import jax.numpy as jnp
from jax.experimental import pallas as pl
from jax.experimental.pallas import tpu as pltpu

# The PyTorch module hard-codes np.sqrt(3) as the scale regardless of D.
INV_SQRT3 = float(1.0 / np.sqrt(3.0))


def _osm_attention_kernel(x_ref, w_qkv_ref, b_qkv_ref, out_ref):
    # x_ref:     (N, L, D)  whole batch, resident in VMEM
    # w_qkv_ref: (D, 3D)    [Wq^T * 1/sqrt(3) | Wk^T | Wv^T]
    # b_qkv_ref: (1, 3D)    [bq  * 1/sqrt(3)  | bk   | bv  ]
    # out_ref:   (N, L, D)
    N, L, D = x_ref.shape
    x = x_ref[...].astype(jnp.float32)                                   # (N, L, D)

    # Fused QKV projection for the whole batch: a single (N*L, D) @ (D, 3D) dot.
    qkv = jnp.dot(x.reshape(N * L, D), w_qkv_ref[...],
                  preferred_element_type=jnp.float32) + b_qkv_ref[...]   # (N*L, 3D)
    qkv = qkv.reshape(N, L, 3 * D)
    q = qkv[:, :, 0 * D:1 * D]   # already pre-scaled by 1/sqrt(3) (folded into weights)
    k = qkv[:, :, 1 * D:2 * D]
    v = qkv[:, :, 2 * D:3 * D]

    # scores = (q / sqrt(3)) @ k^T  — scale already folded into q.
    s = jnp.einsum("nld,nmd->nlm", q, k,
                   preferred_element_type=jnp.float32)                   # (N, L, L)

    # Numerically-stable softmax along the last axis (matches F.softmax).
    s = s - jnp.max(s, axis=-1, keepdims=True)
    p = jnp.exp(s)
    p = p * pl.reciprocal(jnp.sum(p, axis=-1, keepdims=True), approx=False)

    attn = jnp.einsum("nlm,nmd->nld", p, v,
                      preferred_element_type=jnp.float32)                # (N, L, D)

    # Residual add + single full-array store.
    out_ref[...] = (x + attn).astype(out_ref.dtype)


def fuse_qkv_params(params):
    """Host-side, one-time fusion of the three projections (scale folded into q)."""
    d = params["w_q"].shape[0]
    assert d == 3, "OsmAttention hard-codes the 1/sqrt(3) softmax scale (D must be 3)."
    w_qkv = jnp.concatenate(
        [params["w_q"].T * INV_SQRT3, params["w_k"].T, params["w_v"].T],
        axis=1).astype(jnp.float32)                                      # (D, 3D)
    b_qkv = jnp.concatenate(
        [params["b_q"] * INV_SQRT3, params["b_k"], params["b_v"]],
        axis=0).reshape(1, 3 * d).astype(jnp.float32)                    # (1, 3D)
    return w_qkv, b_qkv


@jax.jit
def osm_attention(osm_traj, w_qkv, b_qkv):
    """osm_traj: [N, L, D] -> [N, L, D]; w_qkv/b_qkv from fuse_qkv_params()."""
    N, L, D = osm_traj.shape
    return pl.pallas_call(
        _osm_attention_kernel,
        out_shape=jax.ShapeDtypeStruct((N, L, D), jnp.float32),
        in_specs=[
            pl.BlockSpec(memory_space=pltpu.MemorySpace.VMEM),
            pl.BlockSpec(memory_space=pltpu.MemorySpace.VMEM),
            pl.BlockSpec(memory_space=pltpu.MemorySpace.VMEM),
        ],
        out_specs=pl.BlockSpec(memory_space=pltpu.MemorySpace.VMEM),
        input_output_aliases={0: 0},
    )(osm_traj.astype(jnp.float32), w_qkv, b_qkv)


def reference(osm_traj, params):
    """Pure-JAX reference mirroring the PyTorch forward."""
    q = osm_traj @ params["w_q"].T + params["b_q"]
    k = osm_traj @ params["w_k"].T + params["b_k"]
    v = osm_traj @ params["w_v"].T + params["b_v"]
    s = jnp.einsum("nld,nmd->nlm", q, k) * INV_SQRT3
    p = jax.nn.softmax(s, axis=-1)
    attn = jnp.einsum("nlm,nmd->nld", p, v)
    return osm_traj + attn


def init_params(key, d=3):
    """PyTorch nn.Linear default init: uniform(-1/sqrt(in), 1/sqrt(in))."""
    kk = 1.0 / np.sqrt(d)
    names_shapes = [
        ("w_q", (d, d)), ("b_q", (d,)),
        ("w_k", (d, d)), ("b_k", (d,)),
        ("w_v", (d, d)), ("b_v", (d,)),
    ]
    keys = jax.random.split(key, len(names_shapes))
    return {
        name: jax.random.uniform(k_, shape, jnp.float32, minval=-kk, maxval=kk)
        for k_, (name, shape) in zip(keys, names_shapes)
    }


if __name__ == "__main__":
    N, L, D = 2, 16, 3  # batch, number of OSM features, feature dim (module fixes D=3)
    root = jax.random.PRNGKey(0)
    k_x, k_par = jax.random.split(root)
    osm_traj = jax.random.normal(k_x, (N, L, D), jnp.float32)
    params = init_params(k_par, D)

    # One-time host-side weight fusion (outside the per-call path).
    w_qkv, b_qkv = fuse_qkv_params(params)

    out = jax.block_until_ready(osm_attention(osm_traj, w_qkv, b_qkv))
    assert out.shape == (N, L, D), out.shape

    ref = jax.block_until_ready(reference(osm_traj, params))
    np.testing.assert_allclose(np.asarray(out), np.asarray(ref),
                               rtol=1e-5, atol=1e-5)
    print("KERNEL_OK")
</pallas_src>

<mosaic_0001>
module attributes {stable_mosaic.version = 11 : i64} {
  func.func @_osm_attention_kernel(%arg0: memref<2x16x3xf32, #tpu.memory_space<vmem>>, %arg1: memref<3x9xf32, #tpu.memory_space<vmem>>, %arg2: memref<1x9xf32, #tpu.memory_space<vmem>>, %arg3: memref<2x16x3xf32, #tpu.memory_space<vmem>>) attributes {dimension_semantics = [], scalar_prefetch = 0 : i64, scratch_operands = 0 : i64, tpu.core_type = #tpu.core_type<tc>} {
    %c0 = arith.constant 0 : index
    %c0_0 = arith.constant 0 : index
    %c0_1 = arith.constant 0 : index
    %0 = vector.load %arg0[%c0, %c0_0, %c0_1] : memref<2x16x3xf32, #tpu.memory_space<vmem>>, vector<2x16x3xf32>
    %1 = vector.shape_cast %0 : vector<2x16x3xf32> to vector<32x3xf32>
    %c0_2 = arith.constant 0 : index
    %c0_3 = arith.constant 0 : index
    %2 = vector.load %arg1[%c0_2, %c0_3] : memref<3x9xf32, #tpu.memory_space<vmem>>, vector<3x9xf32>
    %cst = arith.constant dense<0.000000e+00> : vector<32x9xf32>
    %3 = tpu.matmul %1, %2, %cst {dimension_numbers = #tpu.dot_dimension_numbers<[1], [0], [0], [1], [0, 0, 1, 1], [], []>} : vector<32x3xf32>, vector<3x9xf32>, vector<32x9xf32> -> vector<32x9xf32>
    %c0_4 = arith.constant 0 : index
    %c0_5 = arith.constant 0 : index
    %4 = vector.load %arg2[%c0_4, %c0_5] : memref<1x9xf32, #tpu.memory_space<vmem>>, vector<1x9xf32>
    %5 = vector.broadcast %4 : vector<1x9xf32> to vector<32x9xf32>
    %6 = arith.addf %3, %5 : vector<32x9xf32>
    %7 = vector.shape_cast %6 : vector<32x9xf32> to vector<2x16x9xf32>
    %8 = vector.extract_strided_slice %7 {offsets = [0, 0, 0], sizes = [2, 16, 3], strides = [1, 1, 1]} : vector<2x16x9xf32> to vector<2x16x3xf32>
    %9 = vector.extract_strided_slice %7 {offsets = [0, 0, 3], sizes = [2, 16, 3], strides = [1, 1, 1]} : vector<2x16x9xf32> to vector<2x16x3xf32>
    %10 = vector.extract_strided_slice %7 {offsets = [0, 0, 6], sizes = [2, 16, 3], strides = [1, 1, 1]} : vector<2x16x9xf32> to vector<2x16x3xf32>
    "tpu.trace_start"() <{level = 10 : i32, message = "nld,nmd->nlm"}> : () -> ()
    %cst_6 = arith.constant dense<0.000000e+00> : vector<2x16x16xf32>
    %11 = tpu.matmul %8, %9, %cst_6 {dimension_numbers = #tpu.dot_dimension_numbers<[2], [2], [1], [1], [0, 0, 0, 1, 1, 1], [0], [0]>} : vector<2x16x3xf32>, vector<2x16x3xf32>, vector<2x16x16xf32> -> vector<2x16x16xf32>
    "tpu.trace_stop"() : () -> ()
    %cst_7 = arith.constant dense<0xFF800000> : vector<2x16xf32>
    %12 = vector.multi_reduction <maximumf>, %11, %cst_7 [2] : vector<2x16x16xf32> to vector<2x16xf32>
    %13 = vector.shape_cast %12 : vector<2x16xf32> to vector<2x16x1xf32>
    %14 = vector.broadcast %13 : vector<2x16x1xf32> to vector<2x16x16xf32>
    %15 = arith.subf %11, %14 : vector<2x16x16xf32>
    %16 = math.exp %15 : vector<2x16x16xf32>
    %cst_8 = arith.constant dense<0.000000e+00> : vector<2x16xf32>
    %17 = vector.multi_reduction <add>, %16, %cst_8 [2] : vector<2x16x16xf32> to vector<2x16xf32>
    %18 = vector.shape_cast %17 : vector<2x16xf32> to vector<2x16x1xf32>
    %19 = tpu.reciprocal %18 : vector<2x16x1xf32> -> vector<2x16x1xf32>
    %20 = vector.broadcast %19 : vector<2x16x1xf32> to vector<2x16x16xf32>
    %21 = arith.mulf %16, %20 : vector<2x16x16xf32>
    "tpu.trace_start"() <{level = 10 : i32, message = "nlm,nmd->nld"}> : () -> ()
    %cst_9 = arith.constant dense<0.000000e+00> : vector<2x16x3xf32>
    %22 = tpu.matmul %21, %10, %cst_9 {dimension_numbers = #tpu.dot_dimension_numbers<[2], [1], [1], [2], [0, 0, 0, 1, 1, 2], [0], [0]>} : vector<2x16x16xf32>, vector<2x16x3xf32>, vector<2x16x3xf32> -> vector<2x16x3xf32>
    "tpu.trace_stop"() : () -> ()
    %23 = arith.addf %0, %22 : vector<2x16x3xf32>
    %c0_10 = arith.constant 0 : index
    %c0_11 = arith.constant 0 : index
    %c0_12 = arith.constant 0 : index
    %24 = vector.load %arg3[%c0_10, %c0_11, %c0_12] : memref<2x16x3xf32, #tpu.memory_space<vmem>>, vector<2x16x3xf32>
    tpu.vector_store %arg3[%c0_10, %c0_11, %c0_12], %23 {strides = array<i32>} : memref<2x16x3xf32, #tpu.memory_space<vmem>>, vector<2x16x3xf32>,
    return
  }
}

</mosaic_0001>

<llo_original>
// kernel: osm_attention.1
$region0: #{osm_attention.1}
  #allocation0 [shape = 'u32[]', space=smem, size = 0x4, offset = 0x4, fixed_abs, tag = 'smem constant byte address 0x4 - core index']
  #allocation1 [shape = 'u32[144,128]{1,0:T(1,128)}', space=vmem, size = 0x12000, scoped, tag = 'internal scratch']
  %s0 = inlined_call_operand.vmem [shape: f32[2,16,3], index: 0, kind: input, shape index: {}, may-alias: {0,3}]
  %s1 = inlined_call_operand.vmem [shape: f32[3,9], index: 1, kind: input, shape index: {}]
  %s2 = inlined_call_operand.vmem [shape: f32[1,9], index: 2, kind: input, shape index: {}]
  %s3 = inlined_call_operand.vmem [shape: f32[2,16,3], index: 3, kind: output, shape index: {}, may-alias: {0,3}]
  %s4 = sld [smem:[#allocation0]]
  $region22: #{osm_attention.1} parent=0
    _
  %s6 = ssub.s32 1, %s4
  %s7 = scalar_select 0, %s6, %s4
  // Predicated region
  $region2: #{osm_attention.1} parent=0 // pred_check
    _
  $region3: #{osm_attention.1} parent=0 // pred_check_branch
    %9 = sbr.rel (0) target = $region5
  $region4: #{osm_attention.1} parent=0 // pred_region
    _
  $region5: #{osm_attention.1} parent=0 // pred_fallthru
    _
  // Predicated region
  $region6: #{osm_attention.1} parent=0 // pred_check
    _
  $region7: #{osm_attention.1} parent=0 // pred_check_branch
    %11 = sbr.rel (0) target = $region9
  $region8: #{osm_attention.1} parent=0 // pred_region
    _
  $region9: #{osm_attention.1} parent=0 // pred_fallthru
    _
  // Predicated region
  $region10: #{osm_attention.1} parent=0 // pred_check
    _
  $region11: #{osm_attention.1} parent=0 // pred_check_branch
    %13 = sbr.rel (0) target = $region13
  $region12: #{osm_attention.1} parent=0 // pred_region
    _
  $region13: #{osm_attention.1} parent=0 // pred_fallthru
    _
  %v14 = vld [vmem:[%s0] sm:$0xff]
  %v15 = vld [vmem:[%s0 + $0x8] sm:$0xff]
  %v16 = vld [vmem:[%s0 + $0x10] sm:$0xff]
  %v17 = vld [vmem:[%s0 + $0x18] sm:$0xff]
  %v18 = vld [vmem:[%s1] sm:$0x7]
  %v19 = vld [vmem:[%s2] sm:$0x1]
  %v21 = vlaneseq
  %v22 = vshrl.u32 %v21, 7
  %v23 = vsub.s32 0, %v22
  %v24 = vrot.slane %v19, %v23
  %vm26 = vcmask 23552
  %v28 = vsel %vm26, %v14, 0
  %v31 = vsel %vm26, %v15, 0
  %v34 = vsel %vm26, %v16, 0
  %v37 = vsel %vm26, %v17, 0
  %vm39 = vcmask 1042432
  %v41 = vsel %vm39, %v18, 0
  %43 = vmatprep.subr.mxu0 0.0
  %44 = vmatpush1.msra.mxu0 %v41
  %45 = vmatprep.subr.mxu0 0.0
  %46 = vmatpush1.msra.mxu0 0.0
  %47 = vmatprep.subr.mxu0 0.0
  %48 = vmatpush1.msra.mxu0 0.0
  %49 = vmatprep.subr.mxu0 0.0
  %50 = vmatpush1.msra.mxu0 0.0
  %51 = vmatprep.subr.mxu0 0.0
  %52 = vmatpush1.msra.mxu0 0.0
  %53 = vmatprep.subr.mxu0 0.0
  %54 = vmatpush1.msra.mxu0 0.0
  %55 = vmatprep.subr.mxu0 0.0
  %56 = vmatpush1.msra.mxu0 0.0
  %57 = vmatprep.subr.mxu0 0.0
  %58 = vmatpush1.msra.mxu0 0.0
  %59 = vmatprep.subr.mxu0 0.0
  %60 = vmatpush1.msra.mxu0 0.0
  %61 = vmatprep.subr.mxu0 0.0
  %62 = vmatpush1.msra.mxu0 0.0
  %63 = vmatprep.subr.mxu0 0.0
  %64 = vmatpush1.msra.mxu0 0.0
  %65 = vmatprep.subr.mxu0 0.0
  %66 = vmatpush1.msra.mxu0 0.0
  %67 = vmatprep.subr.mxu0 0.0
  %68 = vmatpush1.msra.mxu0 0.0
  %69 = vmatprep.subr.mxu0 0.0
  %70 = vmatpush1.msra.mxu0 0.0
  %71 = vmatprep.subr.mxu0 0.0
  %72 = vmatpush1.msra.mxu0 0.0
  %73 = vmatprep.subr.mxu0 0.0
  %74 = vmatpush1.msra.mxu0 0.0
  %75 = vmatprep.subr.mxu0 0.0
  %76 = vmatpush1.msra.mxu0 0.0
  %77 = vmatprep.subr.mxu0 0.0
  %78 = vmatpush1.msra.mxu0 0.0
  %79 = vmatprep.subr.mxu0 0.0
  %80 = vmatpush1.msra.mxu0 0.0
  %81 = vmatprep.subr.mxu0 0.0
  %82 = vmatpush1.msra.mxu0 0.0
  %83 = vmatprep.subr.mxu0 0.0
  %84 = vmatpush1.msra.mxu0 0.0
  %85 = vmatprep.subr.mxu0 0.0
  %86 = vmatpush1.msra.mxu0 0.0
  %87 = vmatprep.subr.mxu0 0.0
  %88 = vmatpush1.msra.mxu0 0.0
  %89 = vmatprep.subr.mxu0 0.0
  %90 = vmatpush1.msra.mxu0 0.0
  %91 = vmatprep.subr.mxu0 0.0
  %92 = vmatpush1.msra.mxu0 0.0
  %93 = vmatprep.subr.mxu0 0.0
  %94 = vmatpush1.msra.mxu0 0.0
  %95 = vmatprep.subr.mxu0 0.0
  %96 = vmatpush1.msra.mxu0 0.0
  %97 = vmatprep.subr.mxu0 0.0
  %98 = vmatpush1.msra.mxu0 0.0
  %99 = vmatprep.subr.mxu0 0.0
  %100 = vmatpush1.msra.mxu0 0.0
  %101 = vmatprep.subr.mxu0 0.0
  %102 = vmatpush1.msra.mxu0 0.0
  %103 = vmatprep.subr.mxu0 0.0
  %104 = vmatpush1.msra.mxu0 0.0
  %105 = vmatprep.subr.mxu0 0.0
  %106 = vmatpush1.msra.mxu0 0.0
  %107 = vmatprep.mubr.f32.mxu0 0.0
  %108 = vmatmul.mubr.f32.gmra.mrb[0].mxu0 %v28
  %v109 = vpop.f32.mrb[0].mxu0
  %v110 = vadd.f32 %v24, %v109
  %v111 = vpop.f32.mrb[0].mxu0
  %112 = vmatprep.mubr.f32.mxu0 0.0
  %113 = vmatmul.mubr.f32.gmra.mrb[0].mxu0 %v31
  %v114 = vpop.f32.mrb[0].mxu0
  %v115 = vadd.f32 %v24, %v114
  %v116 = vpop.f32.mrb[0].mxu0
  %117 = vmatprep.mubr.f32.mxu0 0.0
  %118 = vmatmul.mubr.f32.gmra.mrb[0].mxu0 %v34
  %v119 = vpop.f32.mrb[0].mxu0
  %v120 = vadd.f32 %v24, %v119
  %v121 = vpop.f32.mrb[0].mxu0
  %122 = vmatprep.mubr.f32.mxu0 0.0
  %123 = vmatmul.mubr.f32.gmra.mrb[0].mxu0 %v37
  %v124 = vpop.f32.mrb[0].mxu0
  %v125 = vadd.f32 %v24, %v124
  %v126 = vpop.f32.mrb[0].mxu0
  %127 = vdwg.mxu0
  %130 = vrot.lane.b32.xlu0 %v110, 125
  %v131 = vpop.permute.xlu0 %130
  %132 = vrot.lane.b32.xlu0 %v115, 125
  %v133 = vpop.permute.xlu0 %132
  %v134 = vsel %vm26, %v110, 0
  %v136 = vsel %vm26, %v115, 0
  %v138 = vsel %vm26, %v131, 0
  %v140 = vsel %vm26, %v133, 0
  %142 = vmatprep.subr.mxu0 0.0
  %143 = vmatpush1.xpose.msra.mxu0 %v138
  %144 = vmatprep.subr.mxu0 0.0
  %145 = vmatpush1.xpose.msra.mxu0 %v140
  %146 = vmatprep.subr.mxu0 0.0
  %147 = vmatpush1.xpose.msra.mxu0 0.0
  %148 = vmatprep.subr.mxu0 0.0
  %149 = vmatpush1.xpose.msra.mxu0 0.0
  %150 = vmatprep.subr.mxu0 0.0
  %151 = vmatpush1.xpose.msra.mxu0 0.0
  %152 = vmatprep.subr.mxu0 0.0
  %153 = vmatpush1.xpose.msra.mxu0 0.0
  %154 = vmatprep.subr.mxu0 0.0
  %155 = vmatpush1.xpose.msra.mxu0 0.0
  %156 = vmatprep.subr.mxu0 0.0
  %157 = vmatpush1.xpose.msra.mxu0 0.0
  %158 = vmatprep.subr.mxu0 0.0
  %159 = vmatpush1.xpose.msra.mxu0 0.0
  %160 = vmatprep.subr.mxu0 0.0
  %161 = vmatpush1.xpose.msra.mxu0 0.0
  %162 = vmatprep.subr.mxu0 0.0
  %163 = vmatpush1.xpose.msra.mxu0 0.0
  %164 = vmatprep.subr.mxu0 0.0
  %165 = vmatpush1.xpose.msra.mxu0 0.0
  %166 = vmatprep.subr.mxu0 0.0
  %167 = vmatpush1.xpose.msra.mxu0 0.0
  %168 = vmatprep.subr.mxu0 0.0
  %169 = vmatpush1.xpose.msra.mxu0 0.0
  %170 = vmatprep.subr.mxu0 0.0
  %171 = vmatpush1.xpose.msra.mxu0 0.0
  %172 = vmatprep.subr.mxu0 0.0
  %173 = vmatpush1.xpose.msra.mxu0 0.0
  %174 = vmatprep.subr.mxu0 0.0
  %175 = vmatpush1.xpose.msra.mxu0 0.0
  %176 = vmatprep.subr.mxu0 0.0
  %177 = vmatpush1.xpose.msra.mxu0 0.0
  %178 = vmatprep.subr.mxu0 0.0
  %179 = vmatpush1.xpose.msra.mxu0 0.0
  %180 = vmatprep.subr.mxu0 0.0
  %181 = vmatpush1.xpose.msra.mxu0 0.0
  %182 = vmatprep.subr.mxu0 0.0
  %183 = vmatpush1.xpose.msra.mxu0 0.0
  %184 = vmatprep.subr.mxu0 0.0
  %185 = vmatpush1.xpose.msra.mxu0 0.0
  %186 = vmatprep.subr.mxu0 0.0
  %187 = vmatpush1.xpose.msra.mxu0 0.0
  %188 = vmatprep.subr.mxu0 0.0
  %189 = vmatpush1.xpose.msra.mxu0 0.0
  %190 = vmatprep.subr.mxu0 0.0
  %191 = vmatpush1.xpose.msra.mxu0 0.0
  %192 = vmatprep.subr.mxu0 0.0
  %193 = vmatpush1.xpose.msra.mxu0 0.0
  %194 = vmatprep.subr.mxu0 0.0
  %195 = vmatpush1.xpose.msra.mxu0 0.0
  %196 = vmatprep.subr.mxu0 0.0
  %197 = vmatpush1.xpose.msra.mxu0 0.0
  %198 = vmatprep.subr.mxu0 0.0
  %199 = vmatpush1.xpose.msra.mxu0 0.0
  %200 = vmatprep.subr.mxu0 0.0
  %201 = vmatpush1.xpose.msra.mxu0 0.0
  %202 = vmatprep.subr.mxu0 0.0
  %203 = vmatpush1.xpose.msra.mxu0 0.0
  %204 = vmatprep.subr.mxu0 0.0
  %205 = vmatpush1.xpose.msra.mxu0 0.0
  %206 = vmatprep.mubr.f32.mxu0 0.0
  %207 = vmatmul.mubr.f32.gmra.mrb[0].mxu0 %v134
  %v208 = vpop.f32.mrb[0].mxu0
  %v209 = vadd.f32 0.0, %v208
  %v210 = vpop.f32.mrb[0].mxu0
  %211 = vmatprep.mubr.f32.mxu0 0.0
  %212 = vmatmul.mubr.f32.gmra.mrb[0].mxu0 %v136
  %v213 = vpop.f32.mrb[0].mxu0
  %v214 = vadd.f32 0.0, %v213
  %v215 = vpop.f32.mrb[0].mxu0
  %216 = vdwg.mxu0
  %219 = vrot.lane.b32.xlu0 %v120, 125
  %v220 = vpop.permute.xlu0 %219
  %221 = vrot.lane.b32.xlu0 %v125, 125
  %v222 = vpop.permute.xlu0 %221
  %v223 = vsel %vm26, %v120, 0
  %v225 = vsel %vm26, %v125, 0
  %v227 = vsel %vm26, %v220, 0
  %v229 = vsel %vm26, %v222, 0
  %231 = vmatprep.subr.mxu0 0.0
  %232 = vmatpush1.xpose.msra.mxu0 %v227
  %233 = vmatprep.subr.mxu0 0.0
  %234 = vmatpush1.xpose.msra.mxu0 %v229
  %235 = vmatprep.subr.mxu0 0.0
  %236 = vmatpush1.xpose.msra.mxu0 0.0
  %237 = vmatprep.subr.mxu0 0.0
  %238 = vmatpush1.xpose.msra.mxu0 0.0
  %239 = vmatprep.subr.mxu0 0.0
  %240 = vmatpush1.xpose.msra.mxu0 0.0
  %241 = vmatprep.subr.mxu0 0.0
  %242 = vmatpush1.xpose.msra.mxu0 0.0
  %243 = vmatprep.subr.mxu0 0.0
  %244 = vmatpush1.xpose.msra.mxu0 0.0
  %245 = vmatprep.subr.mxu0 0.0
  %246 = vmatpush1.xpose.msra.mxu0 0.0
  %247 = vmatprep.subr.mxu0 0.0
  %248 = vmatpush1.xpose.msra.mxu0 0.0
  %249 = vmatprep.subr.mxu0 0.0
  %250 = vmatpush1.xpose.msra.mxu0 0.0
  %251 = vmatprep.subr.mxu0 0.0
  %252 = vmatpush1.xpose.msra.mxu0 0.0
  %253 = vmatprep.subr.mxu0 0.0
  %254 = vmatpush1.xpose.msra.mxu0 0.0
  %255 = vmatprep.subr.mxu0 0.0
  %256 = vmatpush1.xpose.msra.mxu0 0.0
  %257 = vmatprep.subr.mxu0 0.0
  %258 = vmatpush1.xpose.msra.mxu0 0.0
  %259 = vmatprep.subr.mxu0 0.0
  %260 = vmatpush1.xpose.msra.mxu0 0.0
  %261 = vmatprep.subr.mxu0 0.0
  %262 = vmatpush1.xpose.msra.mxu0 0.0
  %263 = vmatprep.subr.mxu0 0.0
  %264 = vmatpush1.xpose.msra.mxu0 0.0
  %265 = vmatprep.subr.mxu0 0.0
  %266 = vmatpush1.xpose.msra.mxu0 0.0
  %267 = vmatprep.subr.mxu0 0.0
  %268 = vmatpush1.xpose.msra.mxu0 0.0
  %269 = vmatprep.subr.mxu0 0.0
  %270 = vmatpush1.xpose.msra.mxu0 0.0
  %271 = vmatprep.subr.mxu0 0.0
  %272 = vmatpush1.xpose.msra.mxu0 0.0
  %273 = vmatprep.subr.mxu0 0.0
  %274 = vmatpush1.xpose.msra.mxu0 0.0
  %275 = vmatprep.subr.mxu0 0.0
  %276 = vmatpush1.xpose.msra.mxu0 0.0
  %277 = vmatprep.subr.mxu0 0.0
  %278 = vmatpush1.xpose.msra.mxu0 0.0
  %279 = vmatprep.subr.mxu0 0.0
  %280 = vmatpush1.xpose.msra.mxu0 0.0
  %281 = vmatprep.subr.mxu0 0.0
  %282 = vmatpush1.xpose.msra.mxu0 0.0
  %283 = vmatprep.subr.mxu0 0.0
  %284 = vmatpush1.xpose.msra.mxu0 0.0
  %285 = vmatprep.subr.mxu0 0.0
  %286 = vmatpush1.xpose.msra.mxu0 0.0
  %287 = vmatprep.subr.mxu0 0.0
  %288 = vmatpush1.xpose.msra.mxu0 0.0
  %289 = vmatprep.subr.mxu0 0.0
  %290 = vmatpush1.xpose.msra.mxu0 0.0
  %291 = vmatprep.subr.mxu0 0.0
  %292 = vmatpush1.xpose.msra.mxu0 0.0
  %293 = vmatprep.subr.mxu0 0.0
  %294 = vmatpush1.xpose.msra.mxu0 0.0
  %295 = vmatprep.mubr.f32.mxu0 0.0
  %296 = vmatmul.mubr.f32.gmra.mrb[0].mxu0 %v223
  %v297 = vpop.f32.mrb[0].mxu0
  %v298 = vadd.f32 0.0, %v297
  %v299 = vpop.f32.mrb[0].mxu0
  %300 = vmatprep.mubr.f32.mxu0 0.0
  %301 = vmatmul.mubr.f32.gmra.mrb[0].mxu0 %v225
  %v302 = vpop.f32.mrb[0].mxu0
  %v303 = vadd.f32 0.0, %v302
  %v304 = vpop.f32.mrb[0].mxu0
  %305 = vdwg.mxu0
  %vm306 = vcmask 130048
  %v307 = vsel %vm306, %v209, -inf
  %308 = vmax.xlane.f32.xlu0 %v307
  %v309 = vpop.xlane.xlu0 %308
  %v310 = vsel %vm306, %v214, -inf
  %311 = vmax.xlane.f32.xlu0 %v310
  %v312 = vpop.xlane.xlu0 %311
  %v313 = vsel %vm306, %v298, -inf
  %314 = vmax.xlane.f32.xlu0 %v313
  %v315 = vpop.xlane.xlu0 %314
  %v316 = vsel %vm306, %v303, -inf
  %317 = vmax.xlane.f32.xlu0 %v316
  %v318 = vpop.xlane.xlu0 %317
  %v319 = vsub.f32 %v209, %v309
  %v320 = vsub.f32 %v214, %v312
  %v321 = vsub.f32 %v298, %v315
  %v322 = vsub.f32 %v303, %v318
  %v323 = vmul.f32 %v319, 1.442695
  %v324 = vpow.pop %v323
  %v325 = vmul.f32 %v320, 1.442695
  %v326 = vpow.pop %v325
  %v327 = vmul.f32 %v321, 1.442695
  %v328 = vpow.pop %v327
  %v329 = vmul.f32 %v322, 1.442695
  %v330 = vpow.pop %v329
  %v331 = vsel %vm306, %v324, 0.0
  %332 = vadd.xlane.f32.xlu0 %v331
  %v333 = vpop.xlane.xlu0 %332
  %v334 = vsel %vm306, %v326, 0.0
  %335 = vadd.xlane.f32.xlu0 %v334
  %v336 = vpop.xlane.xlu0 %335
  %v337 = vsel %vm306, %v328, 0.0
  %338 = vadd.xlane.f32.xlu0 %v337
  %v339 = vpop.xlane.xlu0 %338
  %v340 = vsel %vm306, %v330, 0.0
  %341 = vadd.xlane.f32.xlu0 %v340
  %v342 = vpop.xlane.xlu0 %341
  %v343 = vrcp.pop %v333
  %v344 = vrcp.pop %v336
  %v345 = vrcp.pop %v339
  %v346 = vrcp.pop %v342
  %v347 = vmul.f32 %v324, %v343
  %v348 = vmul.f32 %v326, %v344
  %v349 = vmul.f32 %v328, %v345
  %v350 = vmul.f32 %v330, %v346
  %351 = vrot.lane.b32.xlu0 %v110, 122
  %v352 = vpop.permute.xlu0 %351
  %353 = vrot.lane.b32.xlu0 %v115, 122
  %v354 = vpop.permute.xlu0 %353
  %v358 = vsel %vm306, %v347, 0
  %v361 = vsel %vm306, %v348, 0
  %363 = vmatprep.subr.mxu0 0.0
  %364 = vmatpush1.msra.mxu0 %v352
  %365 = vmatprep.subr.mxu0 0.0
  %366 = vmatpush1.msra.mxu0 %v354
  %367 = vmatprep.subr.mxu0 0.0
  %368 = vmatpush1.msra.mxu0 0.0
  %369 = vmatprep.subr.mxu0 0.0
  %370 = vmatpush1.msra.mxu0 0.0
  %371 = vmatprep.subr.mxu0 0.0
  %372 = vmatpush1.msra.mxu0 0.0
  %373 = vmatprep.subr.mxu0 0.0
  %374 = vmatpush1.msra.mxu0 0.0
  %375 = vmatprep.subr.mxu0 0.0
  %376 = vmatpush1.msra.mxu0 0.0
  %377 = vmatprep.subr.mxu0 0.0
  %378 = vmatpush1.msra.mxu0 0.0
  %379 = vmatprep.subr.mxu0 0.0
  %380 = vmatpush1.msra.mxu0 0.0
  %381 = vmatprep.subr.mxu0 0.0
  %382 = vmatpush1.msra.mxu0 0.0
  %383 = vmatprep.subr.mxu0 0.0
  %384 = vmatpush1.msra.mxu0 0.0
  %385 = vmatprep.subr.mxu0 0.0
  %386 = vmatpush1.msra.mxu0 0.0
  %387 = vmatprep.subr.mxu0 0.0
  %388 = vmatpush1.msra.mxu0 0.0
  %389 = vmatprep.subr.mxu0 0.0
  %390 = vmatpush1.msra.mxu0 0.0
  %391 = vmatprep.subr.mxu0 0.0
  %392 = vmatpush1.msra.mxu0 0.0
  %393 = vmatprep.subr.mxu0 0.0
  %394 = vmatpush1.msra.mxu0 0.0
  %395 = vmatprep.subr.mxu0 0.0
  %396 = vmatpush1.msra.mxu0 0.0
  %397 = vmatprep.subr.mxu0 0.0
  %398 = vmatpush1.msra.mxu0 0.0
  %399 = vmatprep.subr.mxu0 0.0
  %400 = vmatpush1.msra.mxu0 0.0
  %401 = vmatprep.subr.mxu0 0.0
  %402 = vmatpush1.msra.mxu0 0.0
  %403 = vmatprep.subr.mxu0 0.0
  %404 = vmatpush1.msra.mxu0 0.0
  %405 = vmatprep.subr.mxu0 0.0
  %406 = vmatpush1.msra.mxu0 0.0
  %407 = vmatprep.subr.mxu0 0.0
  %408 = vmatpush1.msra.mxu0 0.0
  %409 = vmatprep.subr.mxu0 0.0
  %410 = vmatpush1.msra.mxu0 0.0
  %411 = vmatprep.subr.mxu0 0.0
  %412 = vmatpush1.msra.mxu0 0.0
  %413 = vmatprep.subr.mxu0 0.0
  %414 = vmatpush1.msra.mxu0 0.0
  %415 = vmatprep.subr.mxu0 0.0
  %416 = vmatpush1.msra.mxu0 0.0
  %417 = vmatprep.subr.mxu0 0.0
  %418 = vmatpush1.msra.mxu0 0.0
  %419 = vmatprep.subr.mxu0 0.0
  %420 = vmatpush1.msra.mxu0 0.0
  %421 = vmatprep.subr.mxu0 0.0
  %422 = vmatpush1.msra.mxu0 0.0
  %423 = vmatprep.subr.mxu0 0.0
  %424 = vmatpush1.msra.mxu0 0.0
  %425 = vmatprep.subr.mxu0 0.0
  %426 = vmatpush1.msra.mxu0 0.0
  %427 = vmatprep.mubr.f32.mxu0 0.0
  %428 = vmatmul.mubr.f32.gmra.mrb[0].mxu0 %v358
  %v429 = vpop.f32.mrb[0].mxu0
  %v430 = vadd.f32 0.0, %v429
  %v431 = vpop.f32.mrb[0].mxu0
  %432 = vmatprep.mubr.f32.mxu0 0.0
  %433 = vmatmul.mubr.f32.gmra.mrb[0].mxu0 %v361
  %v434 = vpop.f32.mrb[0].mxu0
  %v435 = vadd.f32 0.0, %v434
  %v436 = vpop.f32.mrb[0].mxu0
  %437 = vdwg.mxu0
  %438 = vrot.lane.b32.xlu0 %v120, 122
  %v439 = vpop.permute.xlu0 %438
  %440 = vrot.lane.b32.xlu0 %v125, 122
  %v441 = vpop.permute.xlu0 %440
  %v445 = vsel %vm306, %v349, 0
  %v448 = vsel %vm306, %v350, 0
  %450 = vmatprep.subr.mxu0 0.0
  %451 = vmatpush1.msra.mxu0 %v439
  %452 = vmatprep.subr.mxu0 0.0
  %453 = vmatpush1.msra.mxu0 %v441
  %454 = vmatprep.subr.mxu0 0.0
  %455 = vmatpush1.msra.mxu0 0.0
  %456 = vmatprep.subr.mxu0 0.0
  %457 = vmatpush1.msra.mxu0 0.0
  %458 = vmatprep.subr.mxu0 0.0
  %459 = vmatpush1.msra.mxu0 0.0
  %460 = vmatprep.subr.mxu0 0.0
  %461 = vmatpush1.msra.mxu0 0.0
  %462 = vmatprep.subr.mxu0 0.0
  %463 = vmatpush1.msra.mxu0 0.0
  %464 = vmatprep.subr.mxu0 0.0
  %465 = vmatpush1.msra.mxu0 0.0
  %466 = vmatprep.subr.mxu0 0.0
  %467 = vmatpush1.msra.mxu0 0.0
  %468 = vmatprep.subr.mxu0 0.0
  %469 = vmatpush1.msra.mxu0 0.0
  %470 = vmatprep.subr.mxu0 0.0
  %471 = vmatpush1.msra.mxu0 0.0
  %472 = vmatprep.subr.mxu0 0.0
  %473 = vmatpush1.msra.mxu0 0.0
  %474 = vmatprep.subr.mxu0 0.0
  %475 = vmatpush1.msra.mxu0 0.0
  %476 = vmatprep.subr.mxu0 0.0
  %477 = vmatpush1.msra.mxu0 0.0
  %478 = vmatprep.subr.mxu0 0.0
  %479 = vmatpush1.msra.mxu0 0.0
  %480 = vmatprep.subr.mxu0 0.0
  %481 = vmatpush1.msra.mxu0 0.0
  %482 = vmatprep.subr.mxu0 0.0
  %483 = vmatpush1.msra.mxu0 0.0
  %484 = vmatprep.subr.mxu0 0.0
  %485 = vmatpush1.msra.mxu0 0.0
  %486 = vmatprep.subr.mxu0 0.0
  %487 = vmatpush1.msra.mxu0 0.0
  %488 = vmatprep.subr.mxu0 0.0
  %489 = vmatpush1.msra.mxu0 0.0
  %490 = vmatprep.subr.mxu0 0.0
  %491 = vmatpush1.msra.mxu0 0.0
  %492 = vmatprep.subr.mxu0 0.0
  %493 = vmatpush1.msra.mxu0 0.0
  %494 = vmatprep.subr.mxu0 0.0
  %495 = vmatpush1.msra.mxu0 0.0
  %496 = vmatprep.subr.mxu0 0.0
  %497 = vmatpush1.msra.mxu0 0.0
  %498 = vmatprep.subr.mxu0 0.0
  %499 = vmatpush1.msra.mxu0 0.0
  %500 = vmatprep.subr.mxu0 0.0
  %501 = vmatpush1.msra.mxu0 0.0
  %502 = vmatprep.subr.mxu0 0.0
  %503 = vmatpush1.msra.mxu0 0.0
  %504 = vmatprep.subr.mxu0 0.0
  %505 = vmatpush1.msra.mxu0 0.0
  %506 = vmatprep.subr.mxu0 0.0
  %507 = vmatpush1.msra.mxu0 0.0
  %508 = vmatprep.subr.mxu0 0.0
  %509 = vmatpush1.msra.mxu0 0.0
  %510 = vmatprep.subr.mxu0 0.0
  %511 = vmatpush1.msra.mxu0 0.0
  %512 = vmatprep.subr.mxu0 0.0
  %513 = vmatpush1.msra.mxu0 0.0
  %514 = vmatprep.mubr.f32.mxu0 0.0
  %515 = vmatmul.mubr.f32.gmra.mrb[0].mxu0 %v445
  %v516 = vpop.f32.mrb[0].mxu0
  %v517 = vadd.f32 0.0, %v516
  %v518 = vpop.f32.mrb[0].mxu0
  %519 = vmatprep.mubr.f32.mxu0 0.0
  %520 = vmatmul.mubr.f32.gmra.mrb[0].mxu0 %v448
  %v521 = vpop.f32.mrb[0].mxu0
  %v522 = vadd.f32 0.0, %v521
  %v523 = vpop.f32.mrb[0].mxu0
  %524 = vdwg.mxu0
  %v525 = vadd.f32 %v14, %v430
  %v526 = vadd.f32 %v15, %v435
  %v527 = vadd.f32 %v16, %v517
  %v528 = vadd.f32 %v17, %v522
  %529 = vst.msk [vmem:[%s3] sm:$0xff] %vm26, %v525
  %530 = vst.msk [vmem:[%s3 + $0x8] sm:$0xff] %vm26, %v526
  %531 = vst.msk [vmem:[%s3 + $0x10] sm:$0xff] %vm26, %v527
  %532 = vst.msk [vmem:[%s3 + $0x18] sm:$0xff] %vm26, %v528
  // Predicated region
  $region14: #{osm_attention.1} parent=0 // pred_check
    _
  $region15: #{osm_attention.1} parent=0 // pred_check_branch
    %534 = sbr.rel (0) target = $region17
  $region16: #{osm_attention.1} parent=0 // pred_region
    _
  $region17: #{osm_attention.1} parent=0 // pred_fallthru
    _
  // Predicated region
  $region18: #{osm_attention.1} parent=0 // pred_check
    _
  $region19: #{osm_attention.1} parent=0 // pred_check_branch
    %536 = sbr.rel (0) target = $region21
  $region20: #{osm_attention.1} parent=0 // pred_region
    _
  $region21: #{osm_attention.1} parent=0 // pred_fallthru
    _

</llo_original>
